<compile_context>
chip_gen: v7x
topology: tpu7x:2x2x1
jax: 0.10.0
libtpu: 0.0.40
codegen_flags: <defaults>
</compile_context>

<pallas_src>
import math

import jax
import jax.numpy as jnp
from jax.experimental import pallas as pl
from jax.experimental.pallas import tpu as pltpu

_LANES = 128
_VMEM_BUDGET = 24 << 20   # double-buffered working-set budget, safe on all generations
_VMEM_LIMIT = 48 << 20    # scoped VMEM limit: > v5e 16 MiB default, < v7x 64 MiB physical


# ------------------------------ Pallas kernels ------------------------------ #

def _ctx_add_pe_kernel(ctx_ref, pe_ref, o_ref):
    # (tT, B, tF) + (tT, 1, tF): broadcast along the batch (sublane) axis on the VPU.
    o_ref[...] = ctx_ref[...] + pe_ref[...]


def _tgt_add_pe_kernel(tgt_ref, pe_ref, o_ref):
    # (Tt, B, F) + (1, B, F): broadcast along the (tiny) target-token axis.
    o_ref[...] = tgt_ref[...] + pe_ref[...]


# ------------------------------ tile selection ------------------------------ #

def _choose_ctx_tiles(T, B, F, itemsize, *, budget_bytes=_VMEM_BUDGET):
    """Pick (token_tile, feature_tile) for the context add.

    Budget counts ctx-in + out (B rows each) + PE (1 row) per token, double-buffered.
    The token tile is capped at ceil(T/2) so the 'parallel' grid always has >= 2
    steps (lets v7x shard the axis across both TensorCores)."""
    per_tok_feat = itemsize * (2 * B + 1) * 2
    f_tile = F
    if F % _LANES == 0:
        # Full F unless even a single full-F token row would blow the budget.
        max_f = max(_LANES, (budget_bytes // per_tok_feat) // _LANES * _LANES)
        f_tile = min(F, max_f)
    t_tile = max(1, min(T, budget_bytes // (per_tok_feat * f_tile)))
    if T >= 2:
        t_tile = min(t_tile, pl.cdiv(T, 2))
    return t_tile, f_tile


# ------------------------------- pallas calls -------------------------------- #

def _context_add_pe(context_tokens, pos_encoding):
    T, B, F = context_tokens.shape
    itemsize = jnp.dtype(context_tokens.dtype).itemsize
    t_tile, f_tile = _choose_ctx_tiles(T, B, F, itemsize)
    grid = (pl.cdiv(T, t_tile), pl.cdiv(F, f_tile))
    return pl.pallas_call(
        _ctx_add_pe_kernel,
        grid=grid,
        in_specs=[
            pl.BlockSpec((t_tile, B, f_tile), lambda ti, fi: (ti, 0, fi)),
            pl.BlockSpec((t_tile, 1, f_tile), lambda ti, fi: (ti, 0, fi)),
        ],
        out_specs=pl.BlockSpec((t_tile, B, f_tile), lambda ti, fi: (ti, 0, fi)),
        out_shape=jax.ShapeDtypeStruct((T, B, F), context_tokens.dtype),
        compiler_params=pltpu.CompilerParams(
            dimension_semantics=("parallel", "parallel"),
            vmem_limit_bytes=_VMEM_LIMIT),
    )(context_tokens, pos_encoding.astype(context_tokens.dtype))


def _target_add_pe(target_tokens, pe_target):
    # Tiny (Tt * B * F, tens of KiB): one full-extent block, no pipelining needed.
    Tt, B, F = target_tokens.shape
    return pl.pallas_call(
        _tgt_add_pe_kernel,
        grid=(1,),
        in_specs=[
            pl.BlockSpec((Tt, B, F), lambda i: (0, 0, 0)),
            pl.BlockSpec((1, B, F), lambda i: (0, 0, 0)),
        ],
        out_specs=pl.BlockSpec((Tt, B, F), lambda i: (0, 0, 0)),
        out_shape=jax.ShapeDtypeStruct((Tt, B, F), target_tokens.dtype),
        compiler_params=pltpu.CompilerParams(
            dimension_semantics=("arbitrary",),
            vmem_limit_bytes=_VMEM_LIMIT),
    )(target_tokens, pe_target.astype(target_tokens.dtype))


# --------------------------------- wrapper ----------------------------------- #

def bbox2token(bbox, tokens_per_dim, num_tokens):
    """[xmin, ymin, w, h] relative bbox -> flat token id (row-major grid), clamped.

    Clamp to [0, num_tokens-1] is a deliberate deviation from the PyTorch module
    (which would index OOB for degenerate bboxes); OOB gathers are unchecked on TPU."""
    xs = jnp.ceil((bbox[:, 0] + bbox[:, 2] / 2.0) * tokens_per_dim) - 1.0
    ys = jnp.ceil((bbox[:, 1] + bbox[:, 3] / 2.0) * tokens_per_dim) - 1.0
    ids = (xs + ys * tokens_per_dim).astype(jnp.int32)
    return jnp.clip(ids, 0, num_tokens - 1)


def positional_encoding_fwd(context_tokens, target_tokens, target_bbox,
                            pos_encoding, tokens_per_dim):
    T, _, F = pos_encoding.shape
    assert context_tokens.shape[0] == T and context_tokens.shape[2] == F

    # Context add: the bandwidth-bound hot path -> Pallas, reads inputs in place.
    ctx_out = _context_add_pe(context_tokens, pos_encoding)

    # Target add: bbox index math + few-KiB PE row gather in plain JAX, tiny add in Pallas.
    token_ids = bbox2token(target_bbox, tokens_per_dim, T)           # (B,) int32
    pe_tgt = jnp.transpose(pos_encoding[token_ids], (1, 0, 2))       # (1, B, F)
    tgt_out = _target_add_pe(target_tokens, pe_tgt)

    return ctx_out, tgt_out


# ----------------------------------- demo ------------------------------------ #

def xavier_uniform(key, shape, dtype=jnp.float32):
    # Matches torch.nn.init.xavier_uniform_ fan computation for >2D tensors.
    receptive = math.prod(shape[2:]) if len(shape) > 2 else 1
    fan_in = shape[1] * receptive
    fan_out = shape[0] * receptive
    bound = math.sqrt(6.0 / (fan_in + fan_out))
    return jax.random.uniform(key, shape, dtype, minval=-bound, maxval=bound)


if __name__ == "__main__":
    NUM_CONTEXT_TOKENS = 64          # tokens_per_dim = 8   (real model: 49)
    NUM_TOKEN_FEATURES = 256         # lane-dense feature dim (real model: 1664 = 13*128)
    BATCH = 4
    tokens_per_dim = int(math.sqrt(NUM_CONTEXT_TOKENS))

    key = jax.random.PRNGKey(0)
    k_pe, k_ctx, k_tgt, k_xy, k_wh = jax.random.split(key, 5)

    pos_encoding = xavier_uniform(k_pe, (NUM_CONTEXT_TOKENS, 1, NUM_TOKEN_FEATURES))
    context_tokens = jax.random.normal(
        k_ctx, (NUM_CONTEXT_TOKENS, BATCH, NUM_TOKEN_FEATURES), jnp.float32)
    target_tokens = jax.random.normal(
        k_tgt, (1, BATCH, NUM_TOKEN_FEATURES), jnp.float32)
    # valid relative bboxes: centers stay inside the unit square
    xy = jax.random.uniform(k_xy, (BATCH, 2), jnp.float32, minval=0.05, maxval=0.45)
    wh = jax.random.uniform(k_wh, (BATCH, 2), jnp.float32, minval=0.10, maxval=0.50)
    target_bbox = jnp.concatenate([xy, wh], axis=1)       # (B, 4) = [xmin, ymin, w, h]

    fwd = jax.jit(positional_encoding_fwd, static_argnums=(4,))
    ctx_out, tgt_out = fwd(context_tokens, target_tokens, target_bbox,
                           pos_encoding, tokens_per_dim)
    jax.block_until_ready((ctx_out, tgt_out))

    # plain-JAX reference (mirrors the PyTorch forward exactly for valid bboxes)
    ids = bbox2token(target_bbox, tokens_per_dim, NUM_CONTEXT_TOKENS)
    ref_ctx = context_tokens + pos_encoding
    ref_tgt = target_tokens + jnp.transpose(pos_encoding[ids], (1, 0, 2))
    assert jnp.allclose(ctx_out, ref_ctx, atol=1e-6), "context mismatch"
    assert jnp.allclose(tgt_out, ref_tgt, atol=1e-6), "target mismatch"

    print("KERNEL_OK")
</pallas_src>

<mosaic_0001>
module attributes {stable_mosaic.version = 11 : i64} {
  func.func @_tgt_add_pe_kernel(%arg0: i32, %arg1: memref<1x4x256xf32, #tpu.memory_space<vmem>>, %arg2: memref<1x4x256xf32, #tpu.memory_space<vmem>>, %arg3: memref<1x4x256xf32, #tpu.memory_space<vmem>>) attributes {dimension_semantics = [#tpu.dimension_semantics<arbitrary>], iteration_bounds = array<i64: 1>, scalar_prefetch = 0 : i64, scratch_operands = 0 : i64, tpu.core_type = #tpu.core_type<tc>, window_params = [{pipeline_mode = #tpu.pipeline_mode<synchronous>, transform_indices = @transform_0, window_bounds = array<i64: 1, 4, 256>}, {pipeline_mode = #tpu.pipeline_mode<synchronous>, transform_indices = @transform_1, window_bounds = array<i64: 1, 4, 256>}, {pipeline_mode = #tpu.pipeline_mode<synchronous>, transform_indices = @transform_2, window_bounds = array<i64: 1, 4, 256>}]} {
    %c0 = arith.constant 0 : index
    %c0_0 = arith.constant 0 : index
    %c0_1 = arith.constant 0 : index
    %0 = vector.load %arg1[%c0, %c0_0, %c0_1] : memref<1x4x256xf32, #tpu.memory_space<vmem>>, vector<1x4x256xf32>
    %c0_2 = arith.constant 0 : index
    %c0_3 = arith.constant 0 : index
    %c0_4 = arith.constant 0 : index
    %1 = vector.load %arg2[%c0_2, %c0_3, %c0_4] : memref<1x4x256xf32, #tpu.memory_space<vmem>>, vector<1x4x256xf32>
    %2 = arith.addf %0, %1 : vector<1x4x256xf32>
    %c0_5 = arith.constant 0 : index
    %c0_6 = arith.constant 0 : index
    %c0_7 = arith.constant 0 : index
    %3 = vector.load %arg3[%c0_5, %c0_6, %c0_7] : memref<1x4x256xf32, #tpu.memory_space<vmem>>, vector<1x4x256xf32>
    tpu.vector_store %arg3[%c0_5, %c0_6, %c0_7], %2 {strides = array<i32>} : memref<1x4x256xf32, #tpu.memory_space<vmem>>, vector<1x4x256xf32>,
    return
  }
  func.func @transform_0(%arg0: i32) -> (i32, i32, i32) {
    %c0_i32 = arith.constant 0 : i32
    %c0_i32_0 = arith.constant 0 : i32
    %c0_i32_1 = arith.constant 0 : i32
    %c0_i32_2 = arith.constant 0 : i32
    return %c0_i32, %c0_i32_0, %c0_i32_1 : i32, i32, i32
  }
  func.func @transform_1(%arg0: i32) -> (i32, i32, i32) {
    %c0_i32 = arith.constant 0 : i32
    %c0_i32_0 = arith.constant 0 : i32
    %c0_i32_1 = arith.constant 0 : i32
    %c0_i32_2 = arith.constant 0 : i32
    return %c0_i32, %c0_i32_0, %c0_i32_1 : i32, i32, i32
  }
  func.func @transform_2(%arg0: i32) -> (i32, i32, i32) {
    %c0_i32 = arith.constant 0 : i32
    %c0_i32_0 = arith.constant 0 : i32
    %c0_i32_1 = arith.constant 0 : i32
    %c0_i32_2 = arith.constant 0 : i32
    return %c0_i32, %c0_i32_0, %c0_i32_1 : i32, i32, i32
  }
}

module attributes {stable_mosaic.version = 11 : i64} {
  func.func @_ctx_add_pe_kernel(%arg0: i32, %arg1: i32, %arg2: memref<32x4x256xf32, #tpu.memory_space<vmem>>, %arg3: memref<32x1x256xf32, #tpu.memory_space<vmem>>, %arg4: memref<32x4x256xf32, #tpu.memory_space<vmem>>) attributes {dimension_semantics = [#tpu.dimension_semantics<parallel>, #tpu.dimension_semantics<parallel>], iteration_bounds = array<i64: 2, 1>, scalar_prefetch = 0 : i64, scratch_operands = 0 : i64, tpu.core_type = #tpu.core_type<tc>, window_params = [{transform_indices = @transform_0, window_bounds = array<i64: 32, 4, 256>}, {transform_indices = @transform_1, window_bounds = array<i64: 32, 1, 256>}, {transform_indices = @transform_2, window_bounds = array<i64: 32, 4, 256>}]} {
    %c0 = arith.constant 0 : index
    %c0_0 = arith.constant 0 : index
    %c0_1 = arith.constant 0 : index
    %0 = vector.load %arg2[%c0, %c0_0, %c0_1] : memref<32x4x256xf32, #tpu.memory_space<vmem>>, vector<32x4x256xf32>
    %c0_2 = arith.constant 0 : index
    %c0_3 = arith.constant 0 : index
    %c0_4 = arith.constant 0 : index
    %1 = vector.load %arg3[%c0_2, %c0_3, %c0_4] : memref<32x1x256xf32, #tpu.memory_space<vmem>>, vector<32x1x256xf32>
    %2 = vector.broadcast %1 : vector<32x1x256xf32> to vector<32x4x256xf32>
    %3 = arith.addf %0, %2 : vector<32x4x256xf32>
    %c0_5 = arith.constant 0 : index
    %c0_6 = arith.constant 0 : index
    %c0_7 = arith.constant 0 : index
    %4 = vector.load %arg4[%c0_5, %c0_6, %c0_7] : memref<32x4x256xf32, #tpu.memory_space<vmem>>, vector<32x4x256xf32>
    tpu.vector_store %arg4[%c0_5, %c0_6, %c0_7], %3 {strides = array<i32>} : memref<32x4x256xf32, #tpu.memory_space<vmem>>, vector<32x4x256xf32>,
    return
  }
  func.func @transform_0(%arg0: i32, %arg1: i32) -> (i32, i32, i32) {
    %c0_i32 = arith.constant 0 : i32
    %c0_i32_0 = arith.constant 0 : i32
    return %arg0, %c0_i32, %arg1 : i32, i32, i32
  }
  func.func @transform_1(%arg0: i32, %arg1: i32) -> (i32, i32, i32) {
    %c0_i32 = arith.constant 0 : i32
    %c0_i32_0 = arith.constant 0 : i32
    return %arg0, %c0_i32, %arg1 : i32, i32, i32
  }
  func.func @transform_2(%arg0: i32, %arg1: i32) -> (i32, i32, i32) {
    %c0_i32 = arith.constant 0 : i32
    %c0_i32_0 = arith.constant 0 : i32
    return %arg0, %c0_i32, %arg1 : i32, i32, i32
  }
}

</mosaic_0001>

<llo_original>
// kernel: positional_encoding_fwd.3
$region0: #{positional_encoding_fwd.3}
  #allocation0 [shape = 'u32[]', space=smem, size = 0x4, offset = 0x4, fixed_abs, tag = 'smem constant byte address 0x4 - core index']
  #allocation1 [shape = 'u32[144,128]{1,0:T(1,128)}', space=vmem, size = 0x12000, scoped, tag = 'internal scratch']
  %s0 = inlined_call_operand.vmem [shape: f32[1,4,256], index: 0, kind: input, shape index: {}]
  %s1 = inlined_call_operand.vmem [shape: f32[1,4,256], index: 1, kind: input, shape index: {}]
  %s2 = inlined_call_operand.hbm [shape: f32[1,4,256], index: 2, kind: output, shape index: {}]
  %s3 = sld [smem:[#allocation0]]
  $region18: #{positional_encoding_fwd.3} parent=0
    _
  %s5 = ssub.s32 1, %s3
  %s6 = scalar_select 0, %s5, %s3
  $region1: #{positional_encoding_fwd.3} parent=0
    #allocation2 [shape = 'u8[4096]{0}', space=vmem, size = 0x1000, scoped, tag = 'output window, operand 0, single buffered']
    #allocation3 [shape = 's32[1]{0}', space=sflag, size = 0x4, scoped, tag = 'scoped memory for positional_encoding_fwd.3']
    %7 = vsyncpa [#allocation3], 0
    // Predicated region
    $region2: #{positional_encoding_fwd.3} parent=1 // pred_check
      _
    $region3: #{positional_encoding_fwd.3} parent=1 // pred_check_branch
      %9 = sbr.rel (0) target = $region5
    $region4: #{positional_encoding_fwd.3} parent=1 // pred_region
      _
    $region5: #{positional_encoding_fwd.3} parent=1 // pred_fallthru
      _
    // Predicated region
    $region6: #{positional_encoding_fwd.3} parent=1 // pred_check
      _
    $region7: #{positional_encoding_fwd.3} parent=1 // pred_check_branch
      %11 = sbr.rel (0) target = $region9
    $region8: #{positional_encoding_fwd.3} parent=1 // pred_region
      _
    $region9: #{positional_encoding_fwd.3} parent=1 // pred_fallthru
      _
    %v12 = vld [vmem:[%s0] sm:$0xff]
    %v13 = vld [vmem:[%s1] sm:$0xff]
    %v14 = vadd.f32 %v12, %v13
    %15 = vst [vmem:[#allocation2] sm:$0xff] %v14
    // Predicated region
    $region10: #{positional_encoding_fwd.3} parent=1 // pred_check
      _
    $region11: #{positional_encoding_fwd.3} parent=1 // pred_check_branch
      %17 = sbr.rel (0) target = $region13
    $region12: #{positional_encoding_fwd.3} parent=1 // pred_region
      %s19 = ssub.s32 128, 128
      %20 = vsyncadd [#allocation3], %s19
      %s22 = sshll.u32 [#allocation2], 4
      %s23 = int_to_ptr.vmem [resolvable:$true] %s22
      %25 = dma.vmem_to_hbm [thread:$0]  %s23, 128, %s2, [#allocation3]
    $region13: #{positional_encoding_fwd.3} parent=1 // pred_fallthru
      _
    // Predicated region
    $region14: #{positional_encoding_fwd.3} parent=1 // pred_check
      _
    $region15: #{positional_encoding_fwd.3} parent=1 // pred_check_branch
      %27 = sbr.rel (0) target = $region17
    $region16: #{positional_encoding_fwd.3} parent=1 // pred_region
      %28 = dma.done [#allocation3], 128
    $region17: #{positional_encoding_fwd.3} parent=1 // pred_fallthru
      _
    %29 = vsyncpa [#allocation3], 1

// kernel: positional_encoding_fwd.2
$region0: #{positional_encoding_fwd.2}
  #allocation0 [shape = 'u32[]', space=smem, size = 0x4, offset = 0x4, fixed_abs, tag = 'smem constant byte address 0x4 - core index']
  #allocation1 [shape = 'u32[144,128]{1,0:T(1,128)}', space=vmem, size = 0x12000, scoped, tag = 'internal scratch']
  %s0 = inlined_call_operand.hbm [shape: f32[64,4,256], index: 0, kind: input, shape index: {}]
  %s1 = inlined_call_operand.vmem [shape: f32[64,1,256], index: 1, kind: input, shape index: {}]
  %s2 = inlined_call_operand.hbm [shape: f32[64,4,256], index: 2, kind: output, shape index: {}]
  %s3 = sld [smem:[#allocation0]]
  $region45: #{positional_encoding_fwd.2} parent=0
    _
  %s5 = ssub.s32 1, %s3
  %s6 = scalar_select 0, %s5, %s3
  $region1: #{positional_encoding_fwd.2} parent=0
    #allocation2 [shape = 'u8[262144]{0}', space=vmem, size = 0x40000, scoped, tag = 'input window, operand 0']
    #allocation3 [shape = 's32[2]{0}', space=sflag, size = 0x8, scoped, tag = 'scoped memory for positional_encoding_fwd.2']
    #allocation4 [shape = 's32[2]{0}', space=sflag, size = 0x8, scoped, tag = 'scoped memory for positional_encoding_fwd.2']
    #allocation5 [shape = 'u8[262144]{0}', space=vmem, size = 0x40000, scoped, tag = 'output window, operand 0']
    %7 = vsyncpa [#allocation3], 0
    %s8 = scalar_lea.sflag [#allocation3], 1
    %9 = vsyncpa %s8, 0
    %10 = vsyncpa [#allocation4], 0
    %s11 = scalar_lea.sflag [#allocation4], 1
    %12 = vsyncpa %s11, 0
    loop: start=0, step=1, limit=4
    $region2: #{positional_encoding_fwd.2} parent=1 // loop_pre_header
      _
    $region3: #{positional_encoding_fwd.2} parent=1 // loop_header
      %s14 = sphi 0, %s18
      %p15 = scmp.ge.s32.totalorder %s14, 4
      %s21 = sphi 0, %s33
      %s22 = sphi 0, %s29
      %s23 = sphi 0, %s21
      %s24 = sphi 0, %s22
      %s25 = sphi 0, %s23
      %s26 = sphi 0, %s24
      %s38 = sphi 0, %s40
      %s41 = sphi 0, %s38
      %s42 = sphi 0, %s41
      %s58 = sphi 0, %s42
      %s66 = sphi 0, %s68
      %s69 = sphi 0, %s66
      %s70 = sphi 0, %s69
      %s86 = sphi 0, %s70
      %s94 = sphi 0, %s96
      %s97 = sphi 0, %s94
      %s98 = sphi 0, %s97
      %s114 = sphi 0, %s98
    $region4: #{positional_encoding_fwd.2} parent=1 // loop_header_branch
      %17 = sbr.rel (%p15) target = $region8
    $region5: #{positional_encoding_fwd.2} parent=1 // loop_body
      %s19 = ssub.s32 %s14, 1
      %s20 = ssub.s32 %s14, 2
      %s27 = sadd.s32 1, %s22
      %p28 = scmp.ge.s32.totalorder %s27, 1
      %s29 = scalar_select %p28, 0, %s27
      %s30 = sadd.s32 1, %s21
      %s31 = scalar_select %p28, %s30, %s21
      %p32 = scmp.ge.s32.totalorder %s31, 2
      %s33 = scalar_select %p32, 0, %s31
      %s34 = ssub.s32 %s21, %s33
      %s35 = ssub.s32 %s22, %s29
      %s36 = sor.u32 %s34, %s35
      %p37 = scmp.eq.s32.totalorder %s36, 0
      %s39 = sadd.s32 %s38, 1
      %s40 = scalar_select %p37, %s38, %s39
      %p43 = pneg %p37
      %p44 = scmp.eq.s32.totalorder %s14, 1
      %p45 = por %p43, %p44
      %p46 = scmp.ne.s32.totalorder %s38, %s41
      %p47 = scmp.eq.s32.totalorder %s14, 0
      %p48 = por %p46, %p47
      %p49 = scmp.ne.s32.totalorder %s38, %s41
      %p50 = scmp.eq.s32.totalorder %s19, 1
      %p51 = por %p49, %p50
      %p52 = scmp.ne.s32.totalorder %s41, %s42
      %p53 = scmp.eq.s32.totalorder %s19, 0
      %p54 = por %p52, %p53
      %p55 = scmp.ne.s32.totalorder %s41, %s42
      %p56 = scmp.eq.s32.totalorder %s20, 1
      %p57 = por %p55, %p56
      %p59 = scmp.ne.s32.totalorder %s42, %s58
      %p60 = scmp.eq.s32.totalorder %s20, 0
      %p61 = por %p59, %p60
      %s62 = ssub.s32 %s21, %s33
      %s63 = ssub.s32 %s22, %s29
      %s64 = sor.u32 %s62, %s63
      %p65 = scmp.eq.s32.totalorder %s64, 0
      %s67 = sadd.s32 %s66, 1
      %s68 = scalar_select %p65, %s66, %s67
      %p71 = pneg %p65
      %p72 = scmp.eq.s32.totalorder %s14, 1
      %p73 = por %p71, %p72
      %p74 = scmp.ne.s32.totalorder %s66, %s69
      %p75 = scmp.eq.s32.totalorder %s14, 0
      %p76 = por %p74, %p75
      %p77 = scmp.ne.s32.totalorder %s66, %s69
      %p78 = scmp.eq.s32.totalorder %s19, 1
      %p79 = por %p77, %p78
      %p80 = scmp.ne.s32.totalorder %s69, %s70
      %p81 = scmp.eq.s32.totalorder %s19, 0
      %p82 = por %p80, %p81
      %p83 = scmp.ne.s32.totalorder %s69, %s70
      %p84 = scmp.eq.s32.totalorder %s20, 1
      %p85 = por %p83, %p84
      %p87 = scmp.ne.s32.totalorder %s70, %s86
      %p88 = scmp.eq.s32.totalorder %s20, 0
      %p89 = por %p87, %p88
      %s90 = ssub.s32 %s21, %s33
      %s91 = ssub.s32 %s22, %s29
      %s92 = sor.u32 %s90, %s91
      %p93 = scmp.eq.s32.totalorder %s92, 0
      %s95 = sadd.s32 %s94, 1
      %s96 = scalar_select %p93, %s94, %s95
      %p99 = pneg %p93
      %p100 = scmp.eq.s32.totalorder %s14, 1
      %p101 = por %p99, %p100
      %p102 = scmp.ne.s32.totalorder %s94, %s97
      %p103 = scmp.eq.s32.totalorder %s14, 0
      %p104 = por %p102, %p103
      %p105 = scmp.ne.s32.totalorder %s94, %s97
      %p106 = scmp.eq.s32.totalorder %s19, 1
      %p107 = por %p105, %p106
      %p108 = scmp.ne.s32.totalorder %s97, %s98
      %p109 = scmp.eq.s32.totalorder %s19, 0
      %p110 = por %p108, %p109
      %p111 = scmp.ne.s32.totalorder %s97, %s98
      %p112 = scmp.eq.s32.totalorder %s20, 1
      %p113 = por %p111, %p112
      %p115 = scmp.ne.s32.totalorder %s98, %s114
      %p116 = scmp.eq.s32.totalorder %s20, 0
      %p117 = por %p115, %p116
      %p118 = scmp.le.s32.totalorder 1, %s14
      %p119 = scmp.lt.s32.totalorder %s14, 3
      %p120 = pnand %p118, %p119
      %p121 = pneg %p120
      // Predicated region
      $region9: #{positional_encoding_fwd.2} parent=5 // pred_check
        _
      $region10: #{positional_encoding_fwd.2} parent=5 // pred_check_branch
        %123 = sbr.rel (%p120) target = $region12
      $region11: #{positional_encoding_fwd.2} parent=5 // pred_region
        %s124 = ssub.s32 %s14, 1
      $region12: #{positional_encoding_fwd.2} parent=5 // pred_fallthru
        _
      %p125 = scmp.lt.s32.totalorder %s14, 2
      // Predicated region
      $region13: #{positional_encoding_fwd.2} parent=5 // pred_check
        %p126 = pneg %p125
      $region14: #{positional_encoding_fwd.2} parent=5 // pred_check_branch
        %128 = sbr.rel (%p126) target = $region16
      $region15: #{positional_encoding_fwd.2} parent=5 // pred_region
        // Predicated region
        $region17: #{positional_encoding_fwd.2} parent=15 // pred_check
          %p129 = pneg %p48
        $region18: #{positional_encoding_fwd.2} parent=15 // pred_check_branch
          %131 = sbr.rel (%p129) target = $region20
        $region19: #{positional_encoding_fwd.2} parent=15 // pred_region
          %s132 = sand.u32 %s38, 1
          %s133 = scalar_lea.sflag [#allocation3], %s132
          %s134 = sand.u32 %s38, 1
          %s135 = smul.addr %s134, 256
          %s136 = scalar_lea.vmem [#allocation2], %s135
          %s137 = smul.u32 32, %s21
          %s138 = smul.u32 2, %s22
          %s140 = ssub.s32 4096, 4096
          %141 = vsyncadd %s133, %s140
          %s142 = smul.addr %s137, 2
          %s143 = sadd.s32 %s138, %s142
          %s144 = smul.addr %s143, 64
          %s145 = scalar_lea.hbm %s0, %s144
          %s146 = sshll.u32 %s136, 4
          %s147 = int_to_ptr.vmem [resolvable:$true] %s146
          %152 = dma.hbm_to_vmem [thread:$0]  %s145, 4096, %s147, %s133, 128, 128, 8
        $region20: #{positional_encoding_fwd.2} parent=15 // pred_fallthru
          _
        // Predicated region
        $region21: #{positional_encoding_fwd.2} parent=15 // pred_check
          %p153 = pneg %p76
        $region22: #{positional_encoding_fwd.2} parent=15 // pred_check_branch
          %155 = sbr.rel (%p153) target = $region24
        $region23: #{positional_encoding_fwd.2} parent=15 // pred_region
          %s156 = smul.u32 32, %s21
          %s157 = smul.u32 2, %s22
          %p158 = scmp.lt.s32.totalorder %s156, 63
          %s159 = scalar_select %p158, %s156, 63
          %p160 = scmp.lt.s32.totalorder %s157, 1
          %s161 = scalar_select %p160, %s157, 1
          %s162 = smul.addr %s159, 2
          %s163 = sadd.s32 %s161, %s162
          %s164 = scalar_lea.vmem %s1, %s163
          %s165 = smul.u32 32, %s21
          %s166 = smul.u32 2, %s22
        $region24: #{positional_encoding_fwd.2} parent=15 // pred_fallthru
          _
      $region16: #{positional_encoding_fwd.2} parent=5 // pred_fallthru
        _
      %p167 = scmp.le.s32.totalorder 1, %s14
      %p168 = scmp.lt.s32.totalorder %s14, 3
      %p169 = pnand %p167, %p168
      %p170 = pneg %p169
      // Predicated region
      $region25: #{positional_encoding_fwd.2} parent=5 // pred_check
        _
      $region26: #{positional_encoding_fwd.2} parent=5 // pred_check_branch
        %172 = sbr.rel (%p169) target = $region28
      $region27: #{positional_encoding_fwd.2} parent=5 // pred_region
        %s173 = ssub.s32 %s14, 1
        %s174 = sand.u32 %s41, 1
        %s175 = scalar_lea.sflag [#allocation3], %s174
        %s176 = sand.u32 %s41, 1
        %s177 = smul.addr %s176, 256
        %s178 = scalar_lea.vmem [#allocation2], %s177
        // Predicated region
        $region29: #{positional_encoding_fwd.2} parent=27 // pred_check
          %p179 = pneg %p54
        $region30: #{positional_encoding_fwd.2} parent=27 // pred_check_branch
          %181 = sbr.rel (%p179) target = $region32
        $region31: #{positional_encoding_fwd.2} parent=27 // pred_region
          %182 = dma.done %s175, 4096
        $region32: #{positional_encoding_fwd.2} parent=27 // pred_fallthru
          _
        %s183 = sand.u32 %s41, 1
        %s184 = scalar_lea.sflag [#allocation3], %s183
        %s185 = sand.u32 %s41, 1
        %s186 = smul.addr %s185, 256
        %s187 = scalar_lea.vmem [#allocation2], %s186
        %p188 = pneg %p54
        %p189 = pneg %p51
        %s190 = smul.u32 32, %s23
        %s191 = smul.u32 2, %s24
        %p192 = scmp.lt.s32.totalorder %s190, 63
        %s193 = scalar_select %p192, %s190, 63
        %p194 = scmp.lt.s32.totalorder %s191, 1
        %s195 = scalar_select %p194, %s191, 1
        %s196 = smul.addr %s193, 2
        %s197 = sadd.s32 %s195, %s196
        %s198 = scalar_lea.vmem %s1, %s197
        %p199 = pneg %p82
        %p200 = pneg %p79
        %p201 = pneg %p110
        %p202 = pneg %p107
        %s203 = sand.u32 %s97, 1
        %s204 = scalar_lea.sflag [#allocation4], %s203
        %s205 = sand.u32 %s97, 1
        %s206 = smul.addr %s205, 256
        %s207 = scalar_lea.vmem [#allocation5], %s206
        %s208 = smul.u32 32, %s23
        %s209 = smul.u32 2, %s24
        %s210 = smul.u32 32, %s23
        %s211 = smul.u32 2, %s24
        %p212 = scmp.lt.s32.totalorder %s210, 63
        %s213 = scalar_select %p212, %s210, 63
        %p214 = scmp.lt.s32.totalorder %s211, 1
        %s215 = scalar_select %p214, %s211, 1
        %s216 = smul.addr %s213, 2
        %s217 = sadd.s32 %s215, %s216
        %s218 = scalar_lea.vmem %s1, %s217
        %s219 = smul.u32 32, %s23
        %s220 = smul.u32 2, %s24
        %s221 = smul.u32 32, %s23
        %s222 = smul.u32 2, %s24
        %v223 = vld [vmem:[%s178] sm:$0xff]
        %v224 = vld [vmem:[%s178 + $0x8] sm:$0xff]
        %v225 = vld [vmem:[%s178 + $0x10] sm:$0xff]
        %v226 = vld [vmem:[%s178 + $0x18] sm:$0xff]
        %v227 = vld [vmem:[%s178 + $0x20] sm:$0xff]
        %v228 = vld [vmem:[%s178 + $0x28] sm:$0xff]
        %v229 = vld [vmem:[%s178 + $0x30] sm:$0xff]
        %v230 = vld [vmem:[%s178 + $0x38] sm:$0xff]
        %v231 = vld [vmem:[%s178 + $0x40] sm:$0xff]
        %v232 = vld [vmem:[%s178 + $0x48] sm:$0xff]
        %v233 = vld [vmem:[%s178 + $0x50] sm:$0xff]
        %v234 = vld [vmem:[%s178 + $0x58] sm:$0xff]
        %v235 = vld [vmem:[%s178 + $0x60] sm:$0xff]
        %v236 = vld [vmem:[%s178 + $0x68] sm:$0xff]
        %v237 = vld [vmem:[%s178 + $0x70] sm:$0xff]
        %v238 = vld [vmem:[%s178 + $0x78] sm:$0xff]
        %v239 = vld [vmem:[%s178 + $0x80] sm:$0xff]
        %v240 = vld [vmem:[%s178 + $0x88] sm:$0xff]
        %v241 = vld [vmem:[%s178 + $0x90] sm:$0xff]
        %v242 = vld [vmem:[%s178 + $0x98] sm:$0xff]
        %v243 = vld [vmem:[%s178 + $0xa0] sm:$0xff]
        %v244 = vld [vmem:[%s178 + $0xa8] sm:$0xff]
        %v245 = vld [vmem:[%s178 + $0xb0] sm:$0xff]
        %v246 = vld [vmem:[%s178 + $0xb8] sm:$0xff]
        %v247 = vld [vmem:[%s178 + $0xc0] sm:$0xff]
        %v248 = vld [vmem:[%s178 + $0xc8] sm:$0xff]
        %v249 = vld [vmem:[%s178 + $0xd0] sm:$0xff]
        %v250 = vld [vmem:[%s178 + $0xd8] sm:$0xff]
        %v251 = vld [vmem:[%s178 + $0xe0] sm:$0xff]
        %v252 = vld [vmem:[%s178 + $0xe8] sm:$0xff]
        %v253 = vld [vmem:[%s178 + $0xf0] sm:$0xff]
        %v254 = vld [vmem:[%s178 + $0xf8] sm:$0xff]
        %v255 = vld [vmem:[%s218] sm:$0x3]
        %v256 = vld [vmem:[%s218 + $0x2] sm:$0x3]
        %v257 = vld [vmem:[%s218 + $0x4] sm:$0x3]
        %v258 = vld [vmem:[%s218 + $0x6] sm:$0x3]
        %v259 = vld [vmem:[%s218 + $0x8] sm:$0x3]
        %v260 = vld [vmem:[%s218 + $0xa] sm:$0x3]
        %v261 = vld [vmem:[%s218 + $0xc] sm:$0x3]
        %v262 = vld [vmem:[%s218 + $0xe] sm:$0x3]
        %v263 = vld [vmem:[%s218 + $0x10] sm:$0x3]
        %v264 = vld [vmem:[%s218 + $0x12] sm:$0x3]
        %v265 = vld [vmem:[%s218 + $0x14] sm:$0x3]
        %v266 = vld [vmem:[%s218 + $0x16] sm:$0x3]
        %v267 = vld [vmem:[%s218 + $0x18] sm:$0x3]
        %v268 = vld [vmem:[%s218 + $0x1a] sm:$0x3]
        %v269 = vld [vmem:[%s218 + $0x1c] sm:$0x3]
        %v270 = vld [vmem:[%s218 + $0x1e] sm:$0x3]
        %v271 = vld [vmem:[%s218 + $0x20] sm:$0x3]
        %v272 = vld [vmem:[%s218 + $0x22] sm:$0x3]
        %v273 = vld [vmem:[%s218 + $0x24] sm:$0x3]
        %v274 = vld [vmem:[%s218 + $0x26] sm:$0x3]
        %v275 = vld [vmem:[%s218 + $0x28] sm:$0x3]
        %v276 = vld [vmem:[%s218 + $0x2a] sm:$0x3]
        %v277 = vld [vmem:[%s218 + $0x2c] sm:$0x3]
        %v278 = vld [vmem:[%s218 + $0x2e] sm:$0x3]
        %v279 = vld [vmem:[%s218 + $0x30] sm:$0x3]
        %v280 = vld [vmem:[%s218 + $0x32] sm:$0x3]
        %v281 = vld [vmem:[%s218 + $0x34] sm:$0x3]
        %v282 = vld [vmem:[%s218 + $0x36] sm:$0x3]
        %v283 = vld [vmem:[%s218 + $0x38] sm:$0x3]
        %v284 = vld [vmem:[%s218 + $0x3a] sm:$0x3]
        %v285 = vld [vmem:[%s218 + $0x3c] sm:$0x3]
        %v286 = vld [vmem:[%s218 + $0x3e] sm:$0x3]
        %v319 = vlaneseq
        %v320 = vshrl.u32 %v319, 7
        %v321 = vsub.s32 0, %v320
        %v322 = vrot.slane %v255, %v321
        %v323 = vlaneseq
        %v324 = vshrl.u32 %v323, 7
        %v325 = vsub.s32 1, %v324
        %v326 = vrot.slane %v255, %v325
        %v327 = vlaneseq
        %v328 = vshrl.u32 %v327, 7
        %v329 = vsub.s32 0, %v328
        %v330 = vrot.slane %v256, %v329
        %v331 = vlaneseq
        %v332 = vshrl.u32 %v331, 7
        %v333 = vsub.s32 1, %v332
        %v334 = vrot.slane %v256, %v333
        %v335 = vlaneseq
        %v336 = vshrl.u32 %v335, 7
        %v337 = vsub.s32 0, %v336
        %v338 = vrot.slane %v257, %v337
        %v339 = vlaneseq
        %v340 = vshrl.u32 %v339, 7
        %v341 = vsub.s32 1, %v340
        %v342 = vrot.slane %v257, %v341
        %v343 = vlaneseq
        %v344 = vshrl.u32 %v343, 7
        %v345 = vsub.s32 0, %v344
        %v346 = vrot.slane %v258, %v345
        %v347 = vlaneseq
        %v348 = vshrl.u32 %v347, 7
        %v349 = vsub.s32 1, %v348
        %v350 = vrot.slane %v258, %v349
        %v351 = vlaneseq
        %v352 = vshrl.u32 %v351, 7
        %v353 = vsub.s32 0, %v352
        %v354 = vrot.slane %v259, %v353
        %v355 = vlaneseq
        %v356 = vshrl.u32 %v355, 7
        %v357 = vsub.s32 1, %v356
        %v358 = vrot.slane %v259, %v357
        %v359 = vlaneseq
        %v360 = vshrl.u32 %v359, 7
        %v361 = vsub.s32 0, %v360
        %v362 = vrot.slane %v260, %v361
        %v363 = vlaneseq
        %v364 = vshrl.u32 %v363, 7
        %v365 = vsub.s32 1, %v364
        %v366 = vrot.slane %v260, %v365
        %v367 = vlaneseq
        %v368 = vshrl.u32 %v367, 7
        %v369 = vsub.s32 0, %v368
        %v370 = vrot.slane %v261, %v369
        %v371 = vlaneseq
        %v372 = vshrl.u32 %v371, 7
        %v373 = vsub.s32 1, %v372
        %v374 = vrot.slane %v261, %v373
        %v375 = vlaneseq
        %v376 = vshrl.u32 %v375, 7
        %v377 = vsub.s32 0, %v376
        %v378 = vrot.slane %v262, %v377
        %v379 = vlaneseq
        %v380 = vshrl.u32 %v379, 7
        %v381 = vsub.s32 1, %v380
        %v382 = vrot.slane %v262, %v381
        %v383 = vlaneseq
        %v384 = vshrl.u32 %v383, 7
        %v385 = vsub.s32 0, %v384
        %v386 = vrot.slane %v263, %v385
        %v387 = vlaneseq
        %v388 = vshrl.u32 %v387, 7
        %v389 = vsub.s32 1, %v388
        %v390 = vrot.slane %v263, %v389
        %v391 = vlaneseq
        %v392 = vshrl.u32 %v391, 7
        %v393 = vsub.s32 0, %v392
        %v394 = vrot.slane %v264, %v393
        %v395 = vlaneseq
        %v396 = vshrl.u32 %v395, 7
        %v397 = vsub.s32 1, %v396
        %v398 = vrot.slane %v264, %v397
        %v399 = vlaneseq
        %v400 = vshrl.u32 %v399, 7
        %v401 = vsub.s32 0, %v400
        %v402 = vrot.slane %v265, %v401
        %v403 = vlaneseq
        %v404 = vshrl.u32 %v403, 7
        %v405 = vsub.s32 1, %v404
        %v406 = vrot.slane %v265, %v405
        %v407 = vlaneseq
        %v408 = vshrl.u32 %v407, 7
        %v409 = vsub.s32 0, %v408
        %v410 = vrot.slane %v266, %v409
        %v411 = vlaneseq
        %v412 = vshrl.u32 %v411, 7
        %v413 = vsub.s32 1, %v412
        %v414 = vrot.slane %v266, %v413
        %v415 = vlaneseq
        %v416 = vshrl.u32 %v415, 7
        %v417 = vsub.s32 0, %v416
        %v418 = vrot.slane %v267, %v417
        %v419 = vlaneseq
        %v420 = vshrl.u32 %v419, 7
        %v421 = vsub.s32 1, %v420
        %v422 = vrot.slane %v267, %v421
        %v423 = vlaneseq
        %v424 = vshrl.u32 %v423, 7
        %v425 = vsub.s32 0, %v424
        %v426 = vrot.slane %v268, %v425
        %v427 = vlaneseq
        %v428 = vshrl.u32 %v427, 7
        %v429 = vsub.s32 1, %v428
        %v430 = vrot.slane %v268, %v429
        %v431 = vlaneseq
        %v432 = vshrl.u32 %v431, 7
        %v433 = vsub.s32 0, %v432
        %v434 = vrot.slane %v269, %v433
        %v435 = vlaneseq
        %v436 = vshrl.u32 %v435, 7
        %v437 = vsub.s32 1, %v436
        %v438 = vrot.slane %v269, %v437
        %v439 = vlaneseq
        %v440 = vshrl.u32 %v439, 7
        %v441 = vsub.s32 0, %v440
        %v442 = vrot.slane %v270, %v441
        %v443 = vlaneseq
        %v444 = vshrl.u32 %v443, 7
        %v445 = vsub.s32 1, %v444
        %v446 = vrot.slane %v270, %v445
        %v447 = vlaneseq
        %v448 = vshrl.u32 %v447, 7
        %v449 = vsub.s32 0, %v448
        %v450 = vrot.slane %v271, %v449
        %v451 = vlaneseq
        %v452 = vshrl.u32 %v451, 7
        %v453 = vsub.s32 1, %v452
        %v454 = vrot.slane %v271, %v453
        %v455 = vlaneseq
        %v456 = vshrl.u32 %v455, 7
        %v457 = vsub.s32 0, %v456
        %v458 = vrot.slane %v272, %v457
        %v459 = vlaneseq
        %v460 = vshrl.u32 %v459, 7
        %v461 = vsub.s32 1, %v460
        %v462 = vrot.slane %v272, %v461
        %v463 = vlaneseq
        %v464 = vshrl.u32 %v463, 7
        %v465 = vsub.s32 0, %v464
        %v466 = vrot.slane %v273, %v465
        %v467 = vlaneseq
        %v468 = vshrl.u32 %v467, 7
        %v469 = vsub.s32 1, %v468
        %v470 = vrot.slane %v273, %v469
        %v471 = vlaneseq
        %v472 = vshrl.u32 %v471, 7
        %v473 = vsub.s32 0, %v472
        %v474 = vrot.slane %v274, %v473
        %v475 = vlaneseq
        %v476 = vshrl.u32 %v475, 7
        %v477 = vsub.s32 1, %v476
        %v478 = vrot.slane %v274, %v477
        %v479 = vlaneseq
        %v480 = vshrl.u32 %v479, 7
        %v481 = vsub.s32 0, %v480
        %v482 = vrot.slane %v275, %v481
        %v483 = vlaneseq
        %v484 = vshrl.u32 %v483, 7
        %v485 = vsub.s32 1, %v484
        %v486 = vrot.slane %v275, %v485
        %v487 = vlaneseq
        %v488 = vshrl.u32 %v487, 7
        %v489 = vsub.s32 0, %v488
        %v490 = vrot.slane %v276, %v489
        %v491 = vlaneseq
        %v492 = vshrl.u32 %v491, 7
        %v493 = vsub.s32 1, %v492
        %v494 = vrot.slane %v276, %v493
        %v495 = vlaneseq
        %v496 = vshrl.u32 %v495, 7
        %v497 = vsub.s32 0, %v496
        %v498 = vrot.slane %v277, %v497
        %v499 = vlaneseq
        %v500 = vshrl.u32 %v499, 7
        %v501 = vsub.s32 1, %v500
        %v502 = vrot.slane %v277, %v501
        %v503 = vlaneseq
        %v504 = vshrl.u32 %v503, 7
        %v505 = vsub.s32 0, %v504
        %v506 = vrot.slane %v278, %v505
        %v507 = vlaneseq
        %v508 = vshrl.u32 %v507, 7
        %v509 = vsub.s32 1, %v508
        %v510 = vrot.slane %v278, %v509
        %v511 = vlaneseq
        %v512 = vshrl.u32 %v511, 7
        %v513 = vsub.s32 0, %v512
        %v514 = vrot.slane %v279, %v513
        %v515 = vlaneseq
        %v516 = vshrl.u32 %v515, 7
        %v517 = vsub.s32 1, %v516
        %v518 = vrot.slane %v279, %v517
        %v519 = vlaneseq
        %v520 = vshrl.u32 %v519, 7
        %v521 = vsub.s32 0, %v520
        %v522 = vrot.slane %v280, %v521
        %v523 = vlaneseq
        %v524 = vshrl.u32 %v523, 7
        %v525 = vsub.s32 1, %v524
        %v526 = vrot.slane %v280, %v525
        %v527 = vlaneseq
        %v528 = vshrl.u32 %v527, 7
        %v529 = vsub.s32 0, %v528
        %v530 = vrot.slane %v281, %v529
        %v531 = vlaneseq
        %v532 = vshrl.u32 %v531, 7
        %v533 = vsub.s32 1, %v532
        %v534 = vrot.slane %v281, %v533
        %v535 = vlaneseq
        %v536 = vshrl.u32 %v535, 7
        %v537 = vsub.s32 0, %v536
        %v538 = vrot.slane %v282, %v537
        %v539 = vlaneseq
        %v540 = vshrl.u32 %v539, 7
        %v541 = vsub.s32 1, %v540
        %v542 = vrot.slane %v282, %v541
        %v543 = vlaneseq
        %v544 = vshrl.u32 %v543, 7
        %v545 = vsub.s32 0, %v544
        %v546 = vrot.slane %v283, %v545
        %v547 = vlaneseq
        %v548 = vshrl.u32 %v547, 7
        %v549 = vsub.s32 1, %v548
        %v550 = vrot.slane %v283, %v549
        %v551 = vlaneseq
        %v552 = vshrl.u32 %v551, 7
        %v553 = vsub.s32 0, %v552
        %v554 = vrot.slane %v284, %v553
        %v555 = vlaneseq
        %v556 = vshrl.u32 %v555, 7
        %v557 = vsub.s32 1, %v556
        %v558 = vrot.slane %v284, %v557
        %v559 = vlaneseq
        %v560 = vshrl.u32 %v559, 7
        %v561 = vsub.s32 0, %v560
        %v562 = vrot.slane %v285, %v561
        %v563 = vlaneseq
        %v564 = vshrl.u32 %v563, 7
        %v565 = vsub.s32 1, %v564
        %v566 = vrot.slane %v285, %v565
        %v567 = vlaneseq
        %v568 = vshrl.u32 %v567, 7
        %v569 = vsub.s32 0, %v568
        %v570 = vrot.slane %v286, %v569
        %v571 = vlaneseq
        %v572 = vshrl.u32 %v571, 7
        %v573 = vsub.s32 1, %v572
        %v574 = vrot.slane %v286, %v573
        %v575 = vcombine.low %v322, %v326
        %v576 = vcombine.low %v330, %v334
        %v577 = vcombine.low %v338, %v342
        %v578 = vcombine.low %v346, %v350
        %v579 = vcombine.low %v354, %v358
        %v580 = vcombine.low %v362, %v366
        %v581 = vcombine.low %v370, %v374
        %v582 = vcombine.low %v378, %v382
        %v583 = vcombine.low %v386, %v390
        %v584 = vcombine.low %v394, %v398
        %v585 = vcombine.low %v402, %v406
        %v586 = vcombine.low %v410, %v414
        %v587 = vcombine.low %v418, %v422
        %v588 = vcombine.low %v426, %v430
        %v589 = vcombine.low %v434, %v438
        %v590 = vcombine.low %v442, %v446
        %v591 = vcombine.low %v450, %v454
        %v592 = vcombine.low %v458, %v462
        %v593 = vcombine.low %v466, %v470
        %v594 = vcombine.low %v474, %v478
        %v595 = vcombine.low %v482, %v486
        %v596 = vcombine.low %v490, %v494
        %v597 = vcombine.low %v498, %v502
        %v598 = vcombine.low %v506, %v510
        %v599 = vcombine.low %v514, %v518
        %v600 = vcombine.low %v522, %v526
        %v601 = vcombine.low %v530, %v534
        %v602 = vcombine.low %v538, %v542
        %v603 = vcombine.low %v546, %v550
        %v604 = vcombine.low %v554, %v558
        %v605 = vcombine.low %v562, %v566
        %v606 = vcombine.low %v570, %v574
        %v639 = vadd.f32 %v223, %v575
        %v640 = vadd.f32 %v224, %v576
        %v641 = vadd.f32 %v225, %v577
        %v642 = vadd.f32 %v226, %v578
        %v643 = vadd.f32 %v227, %v579
        %v644 = vadd.f32 %v228, %v580
        %v645 = vadd.f32 %v229, %v581
        %v646 = vadd.f32 %v230, %v582
        %v647 = vadd.f32 %v231, %v583
        %v648 = vadd.f32 %v232, %v584
        %v649 = vadd.f32 %v233, %v585
        %v650 = vadd.f32 %v234, %v586
        %v651 = vadd.f32 %v235, %v587
        %v652 = vadd.f32 %v236, %v588
        %v653 = vadd.f32 %v237, %v589
        %v654 = vadd.f32 %v238, %v590
        %v655 = vadd.f32 %v239, %v591
        %v656 = vadd.f32 %v240, %v592
        %v657 = vadd.f32 %v241, %v593
        %v658 = vadd.f32 %v242, %v594
        %v659 = vadd.f32 %v243, %v595
        %v660 = vadd.f32 %v244, %v596
        %v661 = vadd.f32 %v245, %v597
        %v662 = vadd.f32 %v246, %v598
        %v663 = vadd.f32 %v247, %v599
        %v664 = vadd.f32 %v248, %v600
        %v665 = vadd.f32 %v249, %v601
        %v666 = vadd.f32 %v250, %v602
        %v667 = vadd.f32 %v251, %v603
        %v668 = vadd.f32 %v252, %v604
        %v669 = vadd.f32 %v253, %v605
        %v670 = vadd.f32 %v254, %v606
        %671 = vst [vmem:[%s207] sm:$0xff] %v639
        %672 = vst [vmem:[%s207 + $0x8] sm:$0xff] %v640
        %673 = vst [vmem:[%s207 + $0x10] sm:$0xff] %v641
        %674 = vst [vmem:[%s207 + $0x18] sm:$0xff] %v642
        %675 = vst [vmem:[%s207 + $0x20] sm:$0xff] %v643
        %676 = vst [vmem:[%s207 + $0x28] sm:$0xff] %v644
        %677 = vst [vmem:[%s207 + $0x30] sm:$0xff] %v645
        %678 = vst [vmem:[%s207 + $0x38] sm:$0xff] %v646
        %679 = vst [vmem:[%s207 + $0x40] sm:$0xff] %v647
        %680 = vst [vmem:[%s207 + $0x48] sm:$0xff] %v648
        %681 = vst [vmem:[%s207 + $0x50] sm:$0xff] %v649
        %682 = vst [vmem:[%s207 + $0x58] sm:$0xff] %v650
        %683 = vst [vmem:[%s207 + $0x60] sm:$0xff] %v651
        %684 = vst [vmem:[%s207 + $0x68] sm:$0xff] %v652
        %685 = vst [vmem:[%s207 + $0x70] sm:$0xff] %v653
        %686 = vst [vmem:[%s207 + $0x78] sm:$0xff] %v654
        %687 = vst [vmem:[%s207 + $0x80] sm:$0xff] %v655
        %688 = vst [vmem:[%s207 + $0x88] sm:$0xff] %v656
        %689 = vst [vmem:[%s207 + $0x90] sm:$0xff] %v657
        %690 = vst [vmem:[%s207 + $0x98] sm:$0xff] %v658
        %691 = vst [vmem:[%s207 + $0xa0] sm:$0xff] %v659
        %692 = vst [vmem:[%s207 + $0xa8] sm:$0xff] %v660
        %693 = vst [vmem:[%s207 + $0xb0] sm:$0xff] %v661
        %694 = vst [vmem:[%s207 + $0xb8] sm:$0xff] %v662
        %695 = vst [vmem:[%s207 + $0xc0] sm:$0xff] %v663
        %696 = vst [vmem:[%s207 + $0xc8] sm:$0xff] %v664
        %697 = vst [vmem:[%s207 + $0xd0] sm:$0xff] %v665
        %698 = vst [vmem:[%s207 + $0xd8] sm:$0xff] %v666
        %699 = vst [vmem:[%s207 + $0xe0] sm:$0xff] %v667
        %700 = vst [vmem:[%s207 + $0xe8] sm:$0xff] %v668
        %701 = vst [vmem:[%s207 + $0xf0] sm:$0xff] %v669
        %702 = vst [vmem:[%s207 + $0xf8] sm:$0xff] %v670
        %s703 = sand.u32 %s97, 1
        %s704 = scalar_lea.sflag [#allocation4], %s703
        %s705 = sand.u32 %s97, 1
        %s706 = smul.addr %s705, 256
        %s707 = scalar_lea.vmem [#allocation5], %s706
        // Predicated region
        $region33: #{positional_encoding_fwd.2} parent=27 // pred_check
          %p708 = pneg %p107
        $region34: #{positional_encoding_fwd.2} parent=27 // pred_check_branch
          %710 = sbr.rel (%p708) target = $region36
        $region35: #{positional_encoding_fwd.2} parent=27 // pred_region
          %s711 = smul.u32 32, %s23
          %s712 = smul.u32 2, %s24
          %s714 = ssub.s32 4096, 4096
          %715 = vsyncadd %s704, %s714
          %s716 = smul.addr %s711, 2
          %s717 = sadd.s32 %s712, %s716
          %s718 = smul.addr %s717, 64
          %s719 = scalar_lea.hbm %s2, %s718
          %s720 = sshll.u32 %s707, 4
          %s721 = int_to_ptr.vmem [resolvable:$true] %s720
          %726 = dma.vmem_to_hbm [thread:$0]  %s721, 4096, %s719, %s704, 128, 128, 8
        $region36: #{positional_encoding_fwd.2} parent=27 // pred_fallthru
          _
      $region28: #{positional_encoding_fwd.2} parent=5 // pred_fallthru
        _
      %p727 = scmp.le.s32.totalorder 2, %s14
      // Predicated region
      $region37: #{positional_encoding_fwd.2} parent=5 // pred_check
        %p728 = pneg %p727
      $region38: #{positional_encoding_fwd.2} parent=5 // pred_check_branch
        %730 = sbr.rel (%p728) target = $region40
      $region39: #{positional_encoding_fwd.2} parent=5 // pred_region
        %s731 = ssub.s32 %s14, 2
        // Predicated region
        $region41: #{positional_encoding_fwd.2} parent=39 // pred_check
          %p732 = pneg %p113
        $region42: #{positional_encoding_fwd.2} parent=39 // pred_check_branch
          %734 = sbr.rel (%p732) target = $region44
        $region43: #{positional_encoding_fwd.2} parent=39 // pred_region
          %s735 = sand.u32 %s98, 1
          %s736 = scalar_lea.sflag [#allocation4], %s735
          %s737 = sand.u32 %s98, 1
          %s738 = smul.addr %s737, 256
          %s739 = scalar_lea.vmem [#allocation5], %s738
          %740 = dma.done %s736, 4096
        $region44: #{positional_encoding_fwd.2} parent=39 // pred_fallthru
          _
      $region40: #{positional_encoding_fwd.2} parent=5 // pred_fallthru
        _
    $region6: #{positional_encoding_fwd.2} parent=1 // loop_footer
      %s18 = sadd.s32 1, %s14
    $region7: #{positional_encoding_fwd.2} parent=1 // loop_footer_branch
      %13 = sbr.rel target = $region3
    $region8: #{positional_encoding_fwd.2} parent=1 // loop_exit
      _
    %741 = vsyncpa [#allocation3], 1
    %s742 = scalar_lea.sflag [#allocation3], 1
    %743 = vsyncpa %s742, 1
    %744 = vsyncpa [#allocation4], 1
    %s745 = scalar_lea.sflag [#allocation4], 1
    %746 = vsyncpa %s745, 1

</llo_original>
